<compile_context>
chip_gen: v5e
topology: v5e:2x2
jax: 0.10.0
libtpu: 0.0.40
codegen_flags: <defaults>
</compile_context>

<pallas_src>
import math

import jax
import jax.numpy as jnp
from jax.experimental import pallas as pl
from jax.experimental.pallas import tpu as pltpu

LANE = 128
BATCH_ALIGN = 16  # native bf16 sublane packing (one bf16 vreg = [16, 128])


def _round_up(x: int, m: int) -> int:
    return ((x + m - 1) // m) * m


def _cdiv(a: int, b: int) -> int:
    return -(-a // b)


# --------------------------------------------------------------------------
# Kernel: fused 3-layer MLP, one batch tile per grid step.
# --------------------------------------------------------------------------
def make_actor_kernel(max_action: float):
    def actor_kernel(s_ref, w1_ref, b1_ref, w2_ref, b2_ref, w3_ref, b3_ref, o_ref):
        # layer 1: (TB, S)bf16 @ (S, 512)bf16 -> f32 acc, +bias, relu
        a = jnp.dot(s_ref[...], w1_ref[...], preferred_element_type=jnp.float32)
        a = jnp.maximum(a + b1_ref[...], 0.0)
        # layer 2: (TB, 512) @ (512, 384)
        a = jnp.dot(a.astype(jnp.bfloat16), w2_ref[...],
                    preferred_element_type=jnp.float32)
        a = jnp.maximum(a + b2_ref[...], 0.0)
        # layer 3: (TB, 384) @ (384, A_pad) -> max_action * tanh, store bf16
        a = jnp.dot(a.astype(jnp.bfloat16), w3_ref[...],
                    preferred_element_type=jnp.float32)
        o_ref[...] = (max_action * jnp.tanh(a + b3_ref[...])).astype(o_ref.dtype)

    return actor_kernel


# --------------------------------------------------------------------------
# Parameter prep: zero-pad feature dims to lane-dense multiples of 128 and
# cast weights to bf16 (biases stay f32; padded entries are exactly zero, so
# relu keeps padded lanes at 0 through the whole network).
# --------------------------------------------------------------------------
def prepare_actor_params(params):
    w1, b1 = params["w1"], params["b1"]
    w2, b2 = params["w2"], params["b2"]
    w3, b3 = params["w3"], params["b3"]
    S, H1 = w1.shape
    _, H2 = w2.shape
    _, A = w3.shape
    H1p = _round_up(H1, LANE)   # 400 -> 512
    H2p = _round_up(H2, LANE)   # 300 -> 384  (do NOT pad to 512 — wasted MXU pass)
    Ap = _round_up(A, LANE)     #   4 -> 128

    def pad2(x, r, c):
        return jnp.pad(x, ((0, r - x.shape[0]), (0, c - x.shape[1])))

    return {
        "w1": pad2(w1, S, H1p).astype(jnp.bfloat16),
        "b1": pad2(b1, 1, H1p).astype(jnp.float32),
        "w2": pad2(w2, H1p, H2p).astype(jnp.bfloat16),
        "b2": pad2(b2, 1, H2p).astype(jnp.float32),
        "w3": pad2(w3, H2p, Ap).astype(jnp.bfloat16),
        "b3": pad2(b3, 1, Ap).astype(jnp.float32),
    }


# --------------------------------------------------------------------------
# Batch-tile selection: amortize per-grid-step overhead with large tiles,
# prefer >=2 tiles (v7x megacore), bound zero-row padding waste.
# --------------------------------------------------------------------------
def _choose_tb(b_pad: int, block_b: int) -> int:
    block_b = max(BATCH_ALIGN, _round_up(block_b, BATCH_ALIGN))
    if b_pad <= min(block_b, 256):
        return b_pad  # tiny batch: one tile, minimal padding
    cands = {tb for tb in (256, 512, 1024, 2048) if tb <= block_b}
    if b_pad <= block_b:
        cands.add(b_pad)                                   # whole batch, one tile
    half = _round_up(_cdiv(b_pad, 2), BATCH_ALIGN)
    if half <= block_b:
        cands.add(half)                                    # two (near-)equal tiles
    if not cands:
        cands.add(block_b)
    best_tb, best_cost = None, None
    for tb in sorted(cands, reverse=True):
        steps = _cdiv(b_pad, tb)
        waste = steps * tb - b_pad                         # discarded zero rows
        # waste + ~128-rows-equivalent per-grid-step overhead + nudge toward
        # >=2 tiles so the second v7x TensorCore gets work
        cost = waste + 128 * steps + (256 if steps < 2 else 0)
        if best_cost is None or cost < best_cost:
            best_tb, best_cost = tb, cost
    return best_tb


# --------------------------------------------------------------------------
# Forward wrapper
# --------------------------------------------------------------------------
def actor_forward(state, padded_params, max_action: float, action_dim: int,
                  block_b: int = 2048):
    """Fused 3-layer MLP forward as one Pallas kernel, tiled over batch."""
    w1, b1 = padded_params["w1"], padded_params["b1"]
    w2, b2 = padded_params["w2"], padded_params["b2"]
    w3, b3 = padded_params["w3"], padded_params["b3"]

    B, S = state.shape
    A_pad = w3.shape[1]

    TB = _choose_tb(_round_up(B, BATCH_ALIGN), block_b)
    B_pad = _round_up(B, TB)
    if B_pad != B:
        state = jnp.pad(state, ((0, B_pad - B), (0, 0)))
    state = state.astype(jnp.bfloat16)   # cast once here: halves streamed input DMA
    grid = (B_pad // TB,)

    # Advisory cost estimate for the XLA scheduler.
    flops = 2 * B_pad * (S * w1.shape[1] + w2.shape[0] * w2.shape[1]
                         + w3.shape[0] * A_pad)
    bytes_accessed = int(
        state.size * state.dtype.itemsize
        + sum(int(x.size) * x.dtype.itemsize for x in (w1, b1, w2, b2, w3, b3))
        + B_pad * A_pad * 2)

    # Weights/biases: one full-array block with a constant index map -> stay
    # resident in VMEM across all batch-grid iterations.
    def const_spec(shape):
        return pl.BlockSpec(shape, lambda i, _s=shape: (0,) * len(_s))

    out = pl.pallas_call(
        make_actor_kernel(max_action),
        out_shape=jax.ShapeDtypeStruct((B_pad, A_pad), jnp.bfloat16),
        grid_spec=pl.GridSpec(
            grid=grid,
            in_specs=[
                pl.BlockSpec((TB, S), lambda i: (i, 0)),
                const_spec(w1.shape), const_spec(b1.shape),
                const_spec(w2.shape), const_spec(b2.shape),
                const_spec(w3.shape), const_spec(b3.shape),
            ],
            out_specs=pl.BlockSpec((TB, A_pad), lambda i: (i, 0)),
        ),
        compiler_params=pltpu.CompilerParams(
            dimension_semantics=("parallel",),   # megacore sharding on v7x
            vmem_limit_bytes=32 * 1024 * 1024,   # above v5e's 16 MiB default
        ),
        cost_estimate=pl.CostEstimate(
            flops=flops,
            transcendentals=B_pad * A_pad,
            bytes_accessed=bytes_accessed,
        ),
    )(state, w1, b1, w2, b2, w3, b3)

    # Strip batch / lane padding; return f32 to the caller.
    return out[:B, :action_dim].astype(jnp.float32)


# --------------------------------------------------------------------------
# Init mimicking PyTorch nn.Linear default (U[-1/sqrt(fan_in), +1/sqrt(fan_in)])
# --------------------------------------------------------------------------
def init_actor_params(key, state_dim: int, action_dim: int):
    def linear(key, fan_in, fan_out):
        kw, kb = jax.random.split(key)
        bound = 1.0 / math.sqrt(fan_in)
        w = jax.random.uniform(kw, (fan_in, fan_out), jnp.float32, -bound, bound)
        b = jax.random.uniform(kb, (1, fan_out), jnp.float32, -bound, bound)
        return w, b

    k1, k2, k3 = jax.random.split(key, 3)
    w1, b1 = linear(k1, state_dim, 400)
    w2, b2 = linear(k2, 400, 300)
    w3, b3 = linear(k3, 300, action_dim)
    return {"w1": w1, "b1": b1, "w2": w2, "b2": b2, "w3": w3, "b3": b3}


# --------------------------------------------------------------------------
# Pure-JAX references
# --------------------------------------------------------------------------
def actor_forward_ref_f32(state, params, max_action: float):
    a = jnp.maximum(state @ params["w1"] + params["b1"], 0.0)
    a = jnp.maximum(a @ params["w2"] + params["b2"], 0.0)
    return max_action * jnp.tanh(a @ params["w3"] + params["b3"])


def actor_forward_ref_bf16(state, params, max_action: float):
    # Same matmul numerics as the kernel: bf16 MXU inputs, f32 accumulation.
    def dot(x, w):
        return jnp.dot(x.astype(jnp.bfloat16), w.astype(jnp.bfloat16),
                       preferred_element_type=jnp.float32)

    a = jnp.maximum(dot(state, params["w1"]) + params["b1"], 0.0)
    a = jnp.maximum(dot(a, params["w2"]) + params["b2"], 0.0)
    return max_action * jnp.tanh(dot(a, params["w3"]) + params["b3"])


# TODO(synk): the `params` setter soft-update (tau) is a training-side utility,
# not part of the forward pass, so it is intentionally not a kernel.

if __name__ == "__main__":
    key = jax.random.PRNGKey(0)
    k_param, k_state = jax.random.split(key)

    batch = 2
    state_dim = 16
    action_dim = 4
    max_action = 2.0

    params = init_actor_params(k_param, state_dim, action_dim)
    padded_params = prepare_actor_params(params)

    # Small-batch path (single tile).
    state = jax.random.normal(k_state, (batch, state_dim), jnp.float32)
    out = jax.block_until_ready(
        actor_forward(state, padded_params, max_action, action_dim))
    assert out.shape == (batch, action_dim)

    ref_bf16 = actor_forward_ref_bf16(state, params, max_action)
    ref_f32 = actor_forward_ref_f32(state, params, max_action)
    # bf16 output store adds <~1e-2 abs error at |out| <= max_action=2.
    assert jnp.allclose(out, ref_bf16, atol=2e-2, rtol=2e-2), \
        "Pallas output mismatch vs bf16 reference"
    assert jnp.allclose(out, ref_f32, atol=5e-2, rtol=5e-2), \
        "Pallas output mismatch vs f32 reference"

    # Multi-tile path (2 batch tiles -> exercises megacore grid + padding slice).
    state2 = jax.random.normal(jax.random.PRNGKey(1), (300, state_dim), jnp.float32)
    out2 = jax.block_until_ready(
        actor_forward(state2, padded_params, max_action, action_dim))
    assert out2.shape == (300, action_dim)
    ref2 = actor_forward_ref_bf16(state2, params, max_action)
    assert jnp.allclose(out2, ref2, atol=2e-2, rtol=2e-2), \
        "Pallas multi-tile output mismatch vs bf16 reference"

    print("KERNEL_OK")
</pallas_src>

<mosaic_0001>
module attributes {stable_mosaic.version = 11 : i64} {
  func.func @actor_kernel(%arg0: i32, %arg1: memref<16x16xbf16, #tpu.memory_space<vmem>>, %arg2: memref<16x512xbf16, #tpu.memory_space<vmem>>, %arg3: memref<1x512xf32, #tpu.memory_space<vmem>>, %arg4: memref<512x384xbf16, #tpu.memory_space<vmem>>, %arg5: memref<1x384xf32, #tpu.memory_space<vmem>>, %arg6: memref<384x128xbf16, #tpu.memory_space<vmem>>, %arg7: memref<1x128xf32, #tpu.memory_space<vmem>>, %arg8: memref<16x128xbf16, #tpu.memory_space<vmem>>) attributes {dimension_semantics = [#tpu.dimension_semantics<parallel>], iteration_bounds = array<i64: 1>, scalar_prefetch = 0 : i64, scratch_operands = 0 : i64, tpu.core_type = #tpu.core_type<tc>, window_params = [{transform_indices = @transform_0, window_bounds = array<i64: 16, 16>}, {pipeline_mode = #tpu.pipeline_mode<synchronous>, transform_indices = @transform_1, window_bounds = array<i64: 16, 512>}, {pipeline_mode = #tpu.pipeline_mode<synchronous>, transform_indices = @transform_2, window_bounds = array<i64: 1, 512>}, {pipeline_mode = #tpu.pipeline_mode<synchronous>, transform_indices = @transform_3, window_bounds = array<i64: 512, 384>}, {pipeline_mode = #tpu.pipeline_mode<synchronous>, transform_indices = @transform_4, window_bounds = array<i64: 1, 384>}, {pipeline_mode = #tpu.pipeline_mode<synchronous>, transform_indices = @transform_5, window_bounds = array<i64: 384, 128>}, {pipeline_mode = #tpu.pipeline_mode<synchronous>, transform_indices = @transform_6, window_bounds = array<i64: 1, 128>}, {transform_indices = @transform_7, window_bounds = array<i64: 16, 128>}]} {
    %c0 = arith.constant 0 : index
    %c0_0 = arith.constant 0 : index
    %0 = vector.load %arg1[%c0, %c0_0] : memref<16x16xbf16, #tpu.memory_space<vmem>>, vector<16x16xbf16>
    %c0_1 = arith.constant 0 : index
    %c0_2 = arith.constant 0 : index
    %1 = vector.load %arg2[%c0_1, %c0_2] : memref<16x512xbf16, #tpu.memory_space<vmem>>, vector<16x512xbf16>
    %cst = arith.constant dense<0.000000e+00> : vector<16x512xf32>
    %2 = tpu.matmul %0, %1, %cst {dimension_numbers = #tpu.dot_dimension_numbers<[1], [0], [0], [1], [0, 0, 1, 1], [], []>} : vector<16x16xbf16>, vector<16x512xbf16>, vector<16x512xf32> -> vector<16x512xf32>
    %c0_3 = arith.constant 0 : index
    %c0_4 = arith.constant 0 : index
    %3 = vector.load %arg3[%c0_3, %c0_4] : memref<1x512xf32, #tpu.memory_space<vmem>>, vector<1x512xf32>
    %4 = vector.broadcast %3 : vector<1x512xf32> to vector<16x512xf32>
    %5 = arith.addf %2, %4 : vector<16x512xf32>
    %cst_5 = arith.constant 0.000000e+00 : f32
    %6 = vector.broadcast %cst_5 : f32 to vector<16x512xf32>
    %7 = arith.maximumf %5, %6 : vector<16x512xf32>
    %8 = arith.truncf %7 : vector<16x512xf32> to vector<16x512xbf16>
    %c0_6 = arith.constant 0 : index
    %c0_7 = arith.constant 0 : index
    %9 = vector.load %arg4[%c0_6, %c0_7] : memref<512x384xbf16, #tpu.memory_space<vmem>>, vector<512x384xbf16>
    %cst_8 = arith.constant dense<0.000000e+00> : vector<16x384xf32>
    %10 = tpu.matmul %8, %9, %cst_8 {dimension_numbers = #tpu.dot_dimension_numbers<[1], [0], [0], [1], [0, 0, 1, 1], [], []>} : vector<16x512xbf16>, vector<512x384xbf16>, vector<16x384xf32> -> vector<16x384xf32>
    %c0_9 = arith.constant 0 : index
    %c0_10 = arith.constant 0 : index
    %11 = vector.load %arg5[%c0_9, %c0_10] : memref<1x384xf32, #tpu.memory_space<vmem>>, vector<1x384xf32>
    %12 = vector.broadcast %11 : vector<1x384xf32> to vector<16x384xf32>
    %13 = arith.addf %10, %12 : vector<16x384xf32>
    %cst_11 = arith.constant 0.000000e+00 : f32
    %14 = vector.broadcast %cst_11 : f32 to vector<16x384xf32>
    %15 = arith.maximumf %13, %14 : vector<16x384xf32>
    %16 = arith.truncf %15 : vector<16x384xf32> to vector<16x384xbf16>
    %c0_12 = arith.constant 0 : index
    %c0_13 = arith.constant 0 : index
    %17 = vector.load %arg6[%c0_12, %c0_13] : memref<384x128xbf16, #tpu.memory_space<vmem>>, vector<384x128xbf16>
    %cst_14 = arith.constant dense<0.000000e+00> : vector<16x128xf32>
    %18 = tpu.matmul %16, %17, %cst_14 {dimension_numbers = #tpu.dot_dimension_numbers<[1], [0], [0], [1], [0, 0, 1, 1], [], []>} : vector<16x384xbf16>, vector<384x128xbf16>, vector<16x128xf32> -> vector<16x128xf32>
    %c0_15 = arith.constant 0 : index
    %c0_16 = arith.constant 0 : index
    %19 = vector.load %arg7[%c0_15, %c0_16] : memref<1x128xf32, #tpu.memory_space<vmem>>, vector<1x128xf32>
    %20 = vector.broadcast %19 : vector<1x128xf32> to vector<16x128xf32>
    %21 = arith.addf %18, %20 : vector<16x128xf32>
    %22 = math.tanh %21 : vector<16x128xf32>
    %cst_17 = arith.constant 2.000000e+00 : f32
    %23 = vector.broadcast %cst_17 : f32 to vector<16x128xf32>
    %24 = arith.mulf %23, %22 : vector<16x128xf32>
    %25 = arith.truncf %24 : vector<16x128xf32> to vector<16x128xbf16>
    %c0_18 = arith.constant 0 : index
    %c0_19 = arith.constant 0 : index
    %26 = vector.load %arg8[%c0_18, %c0_19] : memref<16x128xbf16, #tpu.memory_space<vmem>>, vector<16x128xbf16>
    tpu.vector_store %arg8[%c0_18, %c0_19], %25 {strides = array<i32>} : memref<16x128xbf16, #tpu.memory_space<vmem>>, vector<16x128xbf16>,
    return
  }
  func.func @transform_0(%arg0: i32) -> (i32, i32) {
    %c0_i32 = arith.constant 0 : i32
    %c0_i32_0 = arith.constant 0 : i32
    return %arg0, %c0_i32 : i32, i32
  }
  func.func @transform_1(%arg0: i32) -> (i32, i32) {
    %c0_i32 = arith.constant 0 : i32
    %c0_i32_0 = arith.constant 0 : i32
    %c0_i32_1 = arith.constant 0 : i32
    return %c0_i32, %c0_i32_0 : i32, i32
  }
  func.func @transform_2(%arg0: i32) -> (i32, i32) {
    %c0_i32 = arith.constant 0 : i32
    %c0_i32_0 = arith.constant 0 : i32
    %c0_i32_1 = arith.constant 0 : i32
    return %c0_i32, %c0_i32_0 : i32, i32
  }
  func.func @transform_3(%arg0: i32) -> (i32, i32) {
    %c0_i32 = arith.constant 0 : i32
    %c0_i32_0 = arith.constant 0 : i32
    %c0_i32_1 = arith.constant 0 : i32
    return %c0_i32, %c0_i32_0 : i32, i32
  }
  func.func @transform_4(%arg0: i32) -> (i32, i32) {
    %c0_i32 = arith.constant 0 : i32
    %c0_i32_0 = arith.constant 0 : i32
    %c0_i32_1 = arith.constant 0 : i32
    return %c0_i32, %c0_i32_0 : i32, i32
  }
  func.func @transform_5(%arg0: i32) -> (i32, i32) {
    %c0_i32 = arith.constant 0 : i32
    %c0_i32_0 = arith.constant 0 : i32
    %c0_i32_1 = arith.constant 0 : i32
    return %c0_i32, %c0_i32_0 : i32, i32
  }
  func.func @transform_6(%arg0: i32) -> (i32, i32) {
    %c0_i32 = arith.constant 0 : i32
    %c0_i32_0 = arith.constant 0 : i32
    %c0_i32_1 = arith.constant 0 : i32
    return %c0_i32, %c0_i32_0 : i32, i32
  }
  func.func @transform_7(%arg0: i32) -> (i32, i32) {
    %c0_i32 = arith.constant 0 : i32
    %c0_i32_0 = arith.constant 0 : i32
    return %arg0, %c0_i32 : i32, i32
  }
}

</mosaic_0001>

<llo_original>
// kernel: tpu_custom_call.1
$region0: #{tpu_custom_call.1}
  #allocation0 [shape = 'u32[]', space=smem, size = 0x4, offset = 0x4, fixed_abs, tag = 'smem constant byte address 0x4 - core index']
  #allocation1 [shape = 'u32[72,128]{1,0:T(1,128)}', space=vmem, size = 0x9000, scoped, tag = 'internal scratch']
  %s0 = inlined_call_operand.hbm [shape: bf16[16,16], index: 0, kind: input, shape index: {}]
  %s1 = inlined_call_operand.hbm [shape: bf16[16,512], index: 1, kind: input, shape index: {}]
  %s2 = inlined_call_operand.hbm [shape: f32[1,512], index: 2, kind: input, shape index: {}]
  %s3 = inlined_call_operand.hbm [shape: bf16[512,384], index: 3, kind: input, shape index: {}]
  %s4 = inlined_call_operand.vmem [shape: f32[1,384], index: 4, kind: input, shape index: {}]
  %s5 = inlined_call_operand.hbm [shape: bf16[384,128], index: 5, kind: input, shape index: {}]
  %s6 = inlined_call_operand.vmem [shape: f32[1,128], index: 6, kind: input, shape index: {}]
  %s7 = inlined_call_operand.hbm [shape: bf16[16,128], index: 7, kind: output, shape index: {}]
  %s8 = sld [smem:[#allocation0]]
  $region58: #{tpu_custom_call.1} parent=0
    _
  %s10 = ssub.s32 1, %s8
  %s11 = scalar_select 0, %s10, %s8
  $region1: #{tpu_custom_call.1} parent=0
    #allocation2 [shape = 'u8[4096]{0}', space=vmem, size = 0x1000, scoped, tag = 'input window, operand 0, single buffered']
    #allocation3 [shape = 's32[1]{0}', space=sflag, size = 0x4, scoped, tag = 'scoped memory for tpu_custom_call.1']
    #allocation4 [shape = 's32[1]{0}', space=sflag, size = 0x4, scoped, tag = 'scoped memory for tpu_custom_call.1']
    #allocation5 [shape = 'u8[16384]{0}', space=vmem, size = 0x4000, scoped, tag = 'input window, operand 1, single buffered']
    #allocation6 [shape = 's32[1]{0}', space=sflag, size = 0x4, scoped, tag = 'scoped memory for tpu_custom_call.1']
    #allocation7 [shape = 'u8[2048]{0}', space=vmem, size = 0x800, scoped, tag = 'input window, operand 2, single buffered']
    #allocation8 [shape = 'u8[393216]{0}', space=vmem, size = 0x60000, scoped, tag = 'input window, operand 3, single buffered']
    #allocation9 [shape = 's32[1]{0}', space=sflag, size = 0x4, scoped, tag = 'scoped memory for tpu_custom_call.1']
    #allocation10 [shape = 'u8[98304]{0}', space=vmem, size = 0x18000, scoped, tag = 'input window, operand 5, single buffered']
    #allocation11 [shape = 'u8[4096]{0}', space=vmem, size = 0x1000, scoped, tag = 'output window, operand 0, single buffered']
    %12 = vsyncpa [#allocation3], 0
    %13 = vsyncpa [#allocation6], 0
    %14 = vsyncpa [#allocation9], 0
    %15 = vsyncpa [#allocation4], 0
    // Predicated region
    $region2: #{tpu_custom_call.1} parent=1 // pred_check
      _
    $region3: #{tpu_custom_call.1} parent=1 // pred_check_branch
      %17 = sbr.rel (0) target = $region5
    $region4: #{tpu_custom_call.1} parent=1 // pred_region
      %19 = vsyncadd [#allocation3], 0
      %s20 = sshll.u32 %s0, 4
      %s21 = int_to_ptr.hbm [resolvable:$true] %s20
      %s22 = sshll.u32 [#allocation2], 4
      %s23 = int_to_ptr.vmem [resolvable:$true] %s22
      %28 = dma.hbm_to_vmem [thread:$0]  %s21, 128, %s23, [#allocation3], 64, 64, 4
    $region5: #{tpu_custom_call.1} parent=1 // pred_fallthru
      _
    // Predicated region
    $region6: #{tpu_custom_call.1} parent=1 // pred_check
      _
    $region7: #{tpu_custom_call.1} parent=1 // pred_check_branch
      %30 = sbr.rel (0) target = $region9
    $region8: #{tpu_custom_call.1} parent=1 // pred_region
      %32 = vsyncadd [#allocation6], 0
      %s33 = sshll.u32 %s1, 4
      %s34 = int_to_ptr.hbm [resolvable:$true] %s33
      %s35 = sshll.u32 [#allocation5], 4
      %s36 = int_to_ptr.vmem [resolvable:$true] %s35
      %41 = dma.hbm_to_vmem [thread:$0]  %s34, 512, %s36, [#allocation6], 256, 256, 16
    $region9: #{tpu_custom_call.1} parent=1 // pred_fallthru
      _
    // Predicated region
    $region10: #{tpu_custom_call.1} parent=1 // pred_check
      _
    $region11: #{tpu_custom_call.1} parent=1 // pred_check_branch
      %43 = sbr.rel (0) target = $region13
    $region12: #{tpu_custom_call.1} parent=1 // pred_region
      %45 = vsyncadd [#allocation6], 0
      %s47 = sshll.u32 %s2, 4
      %s48 = int_to_ptr.hbm [resolvable:$true] %s47
      %s49 = sshll.u32 [#allocation7], 4
      %s50 = int_to_ptr.vmem [resolvable:$true] %s49
      %52 = dma.hbm_to_vmem [thread:$0]  %s48, 64, %s50, [#allocation6]
    $region13: #{tpu_custom_call.1} parent=1 // pred_fallthru
      _
    // Predicated region
    $region14: #{tpu_custom_call.1} parent=1 // pred_check
      _
    $region15: #{tpu_custom_call.1} parent=1 // pred_check_branch
      %54 = sbr.rel (0) target = $region17
    $region16: #{tpu_custom_call.1} parent=1 // pred_region
      %56 = vsyncadd [#allocation9], 0
      %s57 = sshll.u32 %s3, 4
      %s58 = int_to_ptr.hbm [resolvable:$true] %s57
      %s59 = sshll.u32 [#allocation8], 4
      %s60 = int_to_ptr.vmem [resolvable:$true] %s59
      %65 = dma.hbm_to_vmem [thread:$0]  %s58, 12288, %s60, [#allocation9], 192, 192, 12
    $region17: #{tpu_custom_call.1} parent=1 // pred_fallthru
      _
    // Predicated region
    $region18: #{tpu_custom_call.1} parent=1 // pred_check
      _
    $region19: #{tpu_custom_call.1} parent=1 // pred_check_branch
      %67 = sbr.rel (0) target = $region21
    $region20: #{tpu_custom_call.1} parent=1 // pred_region
      _
    $region21: #{tpu_custom_call.1} parent=1 // pred_fallthru
      _
    // Predicated region
    $region22: #{tpu_custom_call.1} parent=1 // pred_check
      _
    $region23: #{tpu_custom_call.1} parent=1 // pred_check_branch
      %69 = sbr.rel (0) target = $region25
    $region24: #{tpu_custom_call.1} parent=1 // pred_region
      %71 = vsyncadd [#allocation9], 0
      %s72 = sshll.u32 %s5, 4
      %s73 = int_to_ptr.hbm [resolvable:$true] %s72
      %s74 = sshll.u32 [#allocation10], 4
      %s75 = int_to_ptr.vmem [resolvable:$true] %s74
      %80 = dma.hbm_to_vmem [thread:$0]  %s73, 3072, %s75, [#allocation9], 64, 64, 4
    $region25: #{tpu_custom_call.1} parent=1 // pred_fallthru
      _
    // Predicated region
    $region26: #{tpu_custom_call.1} parent=1 // pred_check
      _
    $region27: #{tpu_custom_call.1} parent=1 // pred_check_branch
      %82 = sbr.rel (0) target = $region29
    $region28: #{tpu_custom_call.1} parent=1 // pred_region
      _
    $region29: #{tpu_custom_call.1} parent=1 // pred_fallthru
      _
    // Predicated region
    $region30: #{tpu_custom_call.1} parent=1 // pred_check
      _
    $region31: #{tpu_custom_call.1} parent=1 // pred_check_branch
      %84 = sbr.rel (0) target = $region33
    $region32: #{tpu_custom_call.1} parent=1 // pred_region
      %86 = dma.done [#allocation3], 128
    $region33: #{tpu_custom_call.1} parent=1 // pred_fallthru
      _
    // Predicated region
    $region34: #{tpu_custom_call.1} parent=1 // pred_check
      _
    $region35: #{tpu_custom_call.1} parent=1 // pred_check_branch
      %88 = sbr.rel (0) target = $region37
    $region36: #{tpu_custom_call.1} parent=1 // pred_region
      %90 = dma.done [#allocation6], 512
    $region37: #{tpu_custom_call.1} parent=1 // pred_fallthru
      _
    // Predicated region
    $region38: #{tpu_custom_call.1} parent=1 // pred_check
      _
    $region39: #{tpu_custom_call.1} parent=1 // pred_check_branch
      %92 = sbr.rel (0) target = $region41
    $region40: #{tpu_custom_call.1} parent=1 // pred_region
      %94 = dma.done [#allocation6], 64
    $region41: #{tpu_custom_call.1} parent=1 // pred_fallthru
      _
    // Predicated region
    $region42: #{tpu_custom_call.1} parent=1 // pred_check
      _
    $region43: #{tpu_custom_call.1} parent=1 // pred_check_branch
      %96 = sbr.rel (0) target = $region45
    $region44: #{tpu_custom_call.1} parent=1 // pred_region
      %98 = dma.done [#allocation9], 12288
    $region45: #{tpu_custom_call.1} parent=1 // pred_fallthru
      _
    // Predicated region
    $region46: #{tpu_custom_call.1} parent=1 // pred_check
      _
    $region47: #{tpu_custom_call.1} parent=1 // pred_check_branch
      %100 = sbr.rel (0) target = $region49
    $region48: #{tpu_custom_call.1} parent=1 // pred_region
      %102 = dma.done [#allocation9], 3072
    $region49: #{tpu_custom_call.1} parent=1 // pred_fallthru
      _
    %v104 = vld [vmem:[#allocation2] sm:$0xf]
    %v105 = vld [vmem:[#allocation2 + $0x4] sm:$0xf]
    %v106 = vld [vmem:[#allocation5] sm:$0xff]
    %v107 = vld [vmem:[#allocation5 + $0x8] sm:$0xff]
    %v108 = vld [vmem:[#allocation5 + $0x10] sm:$0xff]
    %v109 = vld [vmem:[#allocation5 + $0x18] sm:$0xff]
    %v110 = vld [vmem:[#allocation7] sm:$0xf]
    %v112 = vperm.slane %v110, 0
    %v113 = vperm.slane %v110, 1
    %v114 = vperm.slane %v110, 2
    %v115 = vperm.slane %v110, 3
    %v122 = vunpack.c.l.b16 %v104
    %v123 = vunpack.c.l.b16 %v105
    %v124 = vpack.c.b16 %v123, %v122
    %v129 = vunpack.c.l.b16 %v106
    %v130 = vunpack.c.h.b16 %v106
    %v131 = vunpack.c.l.b16 %v107
    %v132 = vunpack.c.h.b16 %v107
    %v133 = vunpack.c.l.b16 %v108
    %v134 = vunpack.c.h.b16 %v108
    %v135 = vunpack.c.l.b16 %v109
    %v136 = vunpack.c.h.b16 %v109
    %v137 = vpack.c.b16 %v133, %v129
    %v138 = vpack.c.b16 %v134, %v130
    %v139 = vpack.c.b16 %v135, %v131
    %v140 = vpack.c.b16 %v136, %v132
    %vm145 = vcmask 130048
    %v147 = vsel %vm145, %v124, 0
    %149 = vmatpush.bf16.msra.mxu0 0
    %150 = vmatpush.bf16.msra.mxu0 0
    %151 = vmatpush.bf16.msra.mxu0 0
    %152 = vmatpush.bf16.msra.mxu0 0
    %153 = vmatpush.bf16.msra.mxu0 0
    %154 = vmatpush.bf16.msra.mxu0 0
    %155 = vmatpush.bf16.msra.mxu0 0
    %156 = vmatpush.bf16.msra.mxu0 %v137
    %157 = vmatmul.bf16.gmra.mxu0 %v147
    %v158 = vpop.f32.mrf.mxu0
    %v159 = vadd.f32 %v112, %v158
    %v160 = vpop.f32.mrf.mxu0
    %v161 = vadd.f32 %v112, %v160
    %162 = vdwg.mxu0
    %163 = vmatpush.bf16.msra.mxu0 0
    %164 = vmatpush.bf16.msra.mxu0 0
    %165 = vmatpush.bf16.msra.mxu0 0
    %166 = vmatpush.bf16.msra.mxu0 0
    %167 = vmatpush.bf16.msra.mxu0 0
    %168 = vmatpush.bf16.msra.mxu0 0
    %169 = vmatpush.bf16.msra.mxu0 0
    %170 = vmatpush.bf16.msra.mxu0 %v138
    %171 = vmatmul.bf16.gmra.mxu0 %v147
    %v172 = vpop.f32.mrf.mxu0
    %v173 = vadd.f32 %v113, %v172
    %v174 = vpop.f32.mrf.mxu0
    %v175 = vadd.f32 %v113, %v174
    %176 = vdwg.mxu0
    %177 = vmatpush.bf16.msra.mxu0 0
    %178 = vmatpush.bf16.msra.mxu0 0
    %179 = vmatpush.bf16.msra.mxu0 0
    %180 = vmatpush.bf16.msra.mxu0 0
    %181 = vmatpush.bf16.msra.mxu0 0
    %182 = vmatpush.bf16.msra.mxu0 0
    %183 = vmatpush.bf16.msra.mxu0 0
    %184 = vmatpush.bf16.msra.mxu0 %v139
    %185 = vmatmul.bf16.gmra.mxu0 %v147
    %v186 = vpop.f32.mrf.mxu0
    %v187 = vadd.f32 %v114, %v186
    %v188 = vpop.f32.mrf.mxu0
    %v189 = vadd.f32 %v114, %v188
    %190 = vdwg.mxu0
    %191 = vmatpush.bf16.msra.mxu0 0
    %192 = vmatpush.bf16.msra.mxu0 0
    %193 = vmatpush.bf16.msra.mxu0 0
    %194 = vmatpush.bf16.msra.mxu0 0
    %195 = vmatpush.bf16.msra.mxu0 0
    %196 = vmatpush.bf16.msra.mxu0 0
    %197 = vmatpush.bf16.msra.mxu0 0
    %198 = vmatpush.bf16.msra.mxu0 %v140
    %199 = vmatmul.bf16.gmra.mxu0 %v147
    %v200 = vpop.f32.mrf.mxu0
    %v201 = vadd.f32 %v115, %v200
    %v202 = vpop.f32.mrf.mxu0
    %v203 = vadd.f32 %v115, %v202
    %204 = vdwg.mxu0
    %v205 = vmax.f32 %v159, 0.0
    %v206 = vmax.f32 %v173, 0.0
    %v207 = vmax.f32 %v187, 0.0
    %v208 = vmax.f32 %v201, 0.0
    %v209 = vmax.f32 %v161, 0.0
    %v210 = vmax.f32 %v175, 0.0
    %v211 = vmax.f32 %v189, 0.0
    %v212 = vmax.f32 %v203, 0.0
    %v213 = vpack.c.bf16 %v209, %v205
    %v214 = vpack.c.bf16 %v210, %v206
    %v215 = vpack.c.bf16 %v211, %v207
    %v216 = vpack.c.bf16 %v212, %v208
    %v217 = vld [vmem:[#allocation8] sm:$0xff]
    %v218 = vld [vmem:[#allocation8 + $0x8] sm:$0xf]
    %v219 = vld [vmem:[#allocation8 + $0xc] sm:$0xff]
    %v220 = vld [vmem:[#allocation8 + $0x14] sm:$0xf]
    %v221 = vld [vmem:[#allocation8 + $0x18] sm:$0xff]
    %v222 = vld [vmem:[#allocation8 + $0x20] sm:$0xf]
    %v223 = vld [vmem:[#allocation8 + $0x24] sm:$0xff]
    %v224 = vld [vmem:[#allocation8 + $0x2c] sm:$0xf]
    %v225 = vld [vmem:[#allocation8 + $0x30] sm:$0xff]
    %v226 = vld [vmem:[#allocation8 + $0x38] sm:$0xf]
    %v227 = vld [vmem:[#allocation8 + $0x3c] sm:$0xff]
    %v228 = vld [vmem:[#allocation8 + $0x44] sm:$0xf]
    %v229 = vld [vmem:[#allocation8 + $0x48] sm:$0xff]
    %v230 = vld [vmem:[#allocation8 + $0x50] sm:$0xf]
    %v231 = vld [vmem:[#allocation8 + $0x54] sm:$0xff]
    %v232 = vld [vmem:[#allocation8 + $0x5c] sm:$0xf]
    %v233 = vld [vmem:[#allocation8 + $0x60] sm:$0xff]
    %v234 = vld [vmem:[#allocation8 + $0x68] sm:$0xf]
    %v235 = vld [vmem:[#allocation8 + $0x6c] sm:$0xff]
    %v236 = vld [vmem:[#allocation8 + $0x74] sm:$0xf]
    %v237 = vld [vmem:[#allocation8 + $0x78] sm:$0xff]
    %v238 = vld [vmem:[#allocation8 + $0x80] sm:$0xf]
    %v239 = vld [vmem:[#allocation8 + $0x84] sm:$0xff]
    %v240 = vld [vmem:[#allocation8 + $0x8c] sm:$0xf]
    %v241 = vld [vmem:[#allocation8 + $0x90] sm:$0xff]
    %v242 = vld [vmem:[#allocation8 + $0x98] sm:$0xf]
    %v243 = vld [vmem:[#allocation8 + $0x9c] sm:$0xff]
    %v244 = vld [vmem:[#allocation8 + $0xa4] sm:$0xf]
    %v245 = vld [vmem:[#allocation8 + $0xa8] sm:$0xff]
    %v246 = vld [vmem:[#allocation8 + $0xb0] sm:$0xf]
    %v247 = vld [vmem:[#allocation8 + $0xb4] sm:$0xff]
    %v248 = vld [vmem:[#allocation8 + $0xbc] sm:$0xf]
    %v249 = vld [vmem:[#allocation8 + $0xc0] sm:$0xff]
    %v250 = vld [vmem:[#allocation8 + $0xc8] sm:$0xf]
    %v251 = vld [vmem:[#allocation8 + $0xcc] sm:$0xff]
    %v252 = vld [vmem:[#allocation8 + $0xd4] sm:$0xf]
    %v253 = vld [vmem:[#allocation8 + $0xd8] sm:$0xff]
    %v254 = vld [vmem:[#allocation8 + $0xe0] sm:$0xf]
    %v255 = vld [vmem:[#allocation8 + $0xe4] sm:$0xff]
    %v256 = vld [vmem:[#allocation8 + $0xec] sm:$0xf]
    %v257 = vld [vmem:[#allocation8 + $0xf0] sm:$0xff]
    %v258 = vld [vmem:[#allocation8 + $0xf8] sm:$0xf]
    %v259 = vld [vmem:[#allocation8 + $0xfc] sm:$0xff]
    %v260 = vld [vmem:[#allocation8 + $0x104] sm:$0xf]
    %v261 = vld [vmem:[#allocation8 + $0x108] sm:$0xff]
    %v262 = vld [vmem:[#allocation8 + $0x110] sm:$0xf]
    %v263 = vld [vmem:[#allocation8 + $0x114] sm:$0xff]
    %v264 = vld [vmem:[#allocation8 + $0x11c] sm:$0xf]
    %v265 = vld [vmem:[#allocation8 + $0x120] sm:$0xff]
    %v266 = vld [vmem:[#allocation8 + $0x128] sm:$0xf]
    %v267 = vld [vmem:[#allocation8 + $0x12c] sm:$0xff]
    %v268 = vld [vmem:[#allocation8 + $0x134] sm:$0xf]
    %v269 = vld [vmem:[#allocation8 + $0x138] sm:$0xff]
    %v270 = vld [vmem:[#allocation8 + $0x140] sm:$0xf]
    %v271 = vld [vmem:[#allocation8 + $0x144] sm:$0xff]
    %v272 = vld [vmem:[#allocation8 + $0x14c] sm:$0xf]
    %v273 = vld [vmem:[#allocation8 + $0x150] sm:$0xff]
    %v274 = vld [vmem:[#allocation8 + $0x158] sm:$0xf]
    %v275 = vld [vmem:[#allocation8 + $0x15c] sm:$0xff]
    %v276 = vld [vmem:[#allocation8 + $0x164] sm:$0xf]
    %v277 = vld [vmem:[#allocation8 + $0x168] sm:$0xff]
    %v278 = vld [vmem:[#allocation8 + $0x170] sm:$0xf]
    %v279 = vld [vmem:[#allocation8 + $0x174] sm:$0xff]
    %v280 = vld [vmem:[#allocation8 + $0x17c] sm:$0xf]
    %v281 = vld [vmem:[#allocation8 + $0x180] sm:$0xff]
    %v282 = vld [vmem:[#allocation8 + $0x188] sm:$0xf]
    %v283 = vld [vmem:[#allocation8 + $0x18c] sm:$0xff]
    %v284 = vld [vmem:[#allocation8 + $0x194] sm:$0xf]
    %v285 = vld [vmem:[#allocation8 + $0x198] sm:$0xff]
    %v286 = vld [vmem:[#allocation8 + $0x1a0] sm:$0xf]
    %v287 = vld [vmem:[#allocation8 + $0x1a4] sm:$0xff]
    %v288 = vld [vmem:[#allocation8 + $0x1ac] sm:$0xf]
    %v289 = vld [vmem:[#allocation8 + $0x1b0] sm:$0xff]
    %v290 = vld [vmem:[#allocation8 + $0x1b8] sm:$0xf]
    %v291 = vld [vmem:[#allocation8 + $0x1bc] sm:$0xff]
    %v292 = vld [vmem:[#allocation8 + $0x1c4] sm:$0xf]
    %v293 = vld [vmem:[#allocation8 + $0x1c8] sm:$0xff]
    %v294 = vld [vmem:[#allocation8 + $0x1d0] sm:$0xf]
    %v295 = vld [vmem:[#allocation8 + $0x1d4] sm:$0xff]
    %v296 = vld [vmem:[#allocation8 + $0x1dc] sm:$0xf]
    %v297 = vld [vmem:[#allocation8 + $0x1e0] sm:$0xff]
    %v298 = vld [vmem:[#allocation8 + $0x1e8] sm:$0xf]
    %v299 = vld [vmem:[#allocation8 + $0x1ec] sm:$0xff]
    %v300 = vld [vmem:[#allocation8 + $0x1f4] sm:$0xf]
    %v301 = vld [vmem:[#allocation8 + $0x1f8] sm:$0xff]
    %v302 = vld [vmem:[#allocation8 + $0x200] sm:$0xf]
    %v303 = vld [vmem:[#allocation8 + $0x204] sm:$0xff]
    %v304 = vld [vmem:[#allocation8 + $0x20c] sm:$0xf]
    %v305 = vld [vmem:[#allocation8 + $0x210] sm:$0xff]
    %v306 = vld [vmem:[#allocation8 + $0x218] sm:$0xf]
    %v307 = vld [vmem:[#allocation8 + $0x21c] sm:$0xff]
    %v308 = vld [vmem:[#allocation8 + $0x224] sm:$0xf]
    %v309 = vld [vmem:[#allocation8 + $0x228] sm:$0xff]
    %v310 = vld [vmem:[#allocation8 + $0x230] sm:$0xf]
    %v311 = vld [vmem:[#allocation8 + $0x234] sm:$0xff]
    %v312 = vld [vmem:[#allocation8 + $0x23c] sm:$0xf]
    %v313 = vld [vmem:[#allocation8 + $0x240] sm:$0xff]
    %v314 = vld [vmem:[#allocation8 + $0x248] sm:$0xf]
    %v315 = vld [vmem:[#allocation8 + $0x24c] sm:$0xff]
    %v316 = vld [vmem:[#allocation8 + $0x254] sm:$0xf]
    %v317 = vld [vmem:[#allocation8 + $0x258] sm:$0xff]
    %v318 = vld [vmem:[#allocation8 + $0x260] sm:$0xf]
    %v319 = vld [vmem:[#allocation8 + $0x264] sm:$0xff]
    %v320 = vld [vmem:[#allocation8 + $0x26c] sm:$0xf]
    %v321 = vld [vmem:[#allocation8 + $0x270] sm:$0xff]
    %v322 = vld [vmem:[#allocation8 + $0x278] sm:$0xf]
    %v323 = vld [vmem:[#allocation8 + $0x27c] sm:$0xff]
    %v324 = vld [vmem:[#allocation8 + $0x284] sm:$0xf]
    %v325 = vld [vmem:[#allocation8 + $0x288] sm:$0xff]
    %v326 = vld [vmem:[#allocation8 + $0x290] sm:$0xf]
    %v327 = vld [vmem:[#allocation8 + $0x294] sm:$0xff]
    %v328 = vld [vmem:[#allocation8 + $0x29c] sm:$0xf]
    %v329 = vld [vmem:[#allocation8 + $0x2a0] sm:$0xff]
    %v330 = vld [vmem:[#allocation8 + $0x2a8] sm:$0xf]
    %v331 = vld [vmem:[#allocation8 + $0x2ac] sm:$0xff]
    %v332 = vld [vmem:[#allocation8 + $0x2b4] sm:$0xf]
    %v333 = vld [vmem:[#allocation8 + $0x2b8] sm:$0xff]
    %v334 = vld [vmem:[#allocation8 + $0x2c0] sm:$0xf]
    %v335 = vld [vmem:[#allocation8 + $0x2c4] sm:$0xff]
    %v336 = vld [vmem:[#allocation8 + $0x2cc] sm:$0xf]
    %v337 = vld [vmem:[#allocation8 + $0x2d0] sm:$0xff]
    %v338 = vld [vmem:[#allocation8 + $0x2d8] sm:$0xf]
    %v339 = vld [vmem:[#allocation8 + $0x2dc] sm:$0xff]
    %v340 = vld [vmem:[#allocation8 + $0x2e4] sm:$0xf]
    %v341 = vld [vmem:[#allocation8 + $0x2e8] sm:$0xff]
    %v342 = vld [vmem:[#allocation8 + $0x2f0] sm:$0xf]
    %v343 = vld [vmem:[#allocation8 + $0x2f4] sm:$0xff]
    %v344 = vld [vmem:[#allocation8 + $0x2fc] sm:$0xf]
    %v345 = vld [vmem:[%s4] sm:$0x7]
    %v347 = vperm.slane %v345, 0
    %v348 = vperm.slane %v345, 1
    %v349 = vperm.slane %v345, 2
    %v481 = vunpack.c.l.b16 %v217
    %v482 = vunpack.c.h.b16 %v217
    %v483 = vunpack.c.l.b16 %v218
    %v484 = vunpack.c.l.b16 %v219
    %v485 = vunpack.c.h.b16 %v219
    %v486 = vunpack.c.l.b16 %v220
    %v487 = vunpack.c.l.b16 %v221
    %v488 = vunpack.c.h.b16 %v221
    %v489 = vunpack.c.l.b16 %v222
    %v490 = vunpack.c.l.b16 %v223
    %v491 = vunpack.c.h.b16 %v223
    %v492 = vunpack.c.l.b16 %v224
    %v493 = vunpack.c.l.b16 %v225
    %v494 = vunpack.c.h.b16 %v225
    %v495 = vunpack.c.l.b16 %v226
    %v496 = vunpack.c.l.b16 %v227
    %v497 = vunpack.c.h.b16 %v227
    %v498 = vunpack.c.l.b16 %v228
    %v499 = vunpack.c.l.b16 %v229
    %v500 = vunpack.c.h.b16 %v229
    %v501 = vunpack.c.l.b16 %v230
    %v502 = vunpack.c.l.b16 %v231
    %v503 = vunpack.c.h.b16 %v231
    %v504 = vunpack.c.l.b16 %v232
    %v505 = vunpack.c.l.b16 %v233
    %v506 = vunpack.c.h.b16 %v233
    %v507 = vunpack.c.l.b16 %v234
    %v508 = vunpack.c.l.b16 %v235
    %v509 = vunpack.c.h.b16 %v235
    %v510 = vunpack.c.l.b16 %v236
    %v511 = vunpack.c.l.b16 %v237
    %v512 = vunpack.c.h.b16 %v237
    %v513 = vunpack.c.l.b16 %v238
    %v514 = vunpack.c.l.b16 %v239
    %v515 = vunpack.c.h.b16 %v239
    %v516 = vunpack.c.l.b16 %v240
    %v517 = vunpack.c.l.b16 %v241
    %v518 = vunpack.c.h.b16 %v241
    %v519 = vunpack.c.l.b16 %v242
    %v520 = vunpack.c.l.b16 %v243
    %v521 = vunpack.c.h.b16 %v243
    %v522 = vunpack.c.l.b16 %v244
    %v523 = vunpack.c.l.b16 %v245
    %v524 = vunpack.c.h.b16 %v245
    %v525 = vunpack.c.l.b16 %v246
    %v526 = vunpack.c.l.b16 %v247
    %v527 = vunpack.c.h.b16 %v247
    %v528 = vunpack.c.l.b16 %v248
    %v529 = vunpack.c.l.b16 %v249
    %v530 = vunpack.c.h.b16 %v249
    %v531 = vunpack.c.l.b16 %v250
    %v532 = vunpack.c.l.b16 %v251
    %v533 = vunpack.c.h.b16 %v251
    %v534 = vunpack.c.l.b16 %v252
    %v535 = vunpack.c.l.b16 %v253
    %v536 = vunpack.c.h.b16 %v253
    %v537 = vunpack.c.l.b16 %v254
    %v538 = vunpack.c.l.b16 %v255
    %v539 = vunpack.c.h.b16 %v255
    %v540 = vunpack.c.l.b16 %v256
    %v541 = vunpack.c.l.b16 %v257
    %v542 = vunpack.c.h.b16 %v257
    %v543 = vunpack.c.l.b16 %v258
    %v544 = vunpack.c.l.b16 %v259
    %v545 = vunpack.c.h.b16 %v259
    %v546 = vunpack.c.l.b16 %v260
    %v547 = vunpack.c.l.b16 %v261
    %v548 = vunpack.c.h.b16 %v261
    %v549 = vunpack.c.l.b16 %v262
    %v550 = vunpack.c.l.b16 %v263
    %v551 = vunpack.c.h.b16 %v263
    %v552 = vunpack.c.l.b16 %v264
    %v553 = vunpack.c.l.b16 %v265
    %v554 = vunpack.c.h.b16 %v265
    %v555 = vunpack.c.l.b16 %v266
    %v556 = vunpack.c.l.b16 %v267
    %v557 = vunpack.c.h.b16 %v267
    %v558 = vunpack.c.l.b16 %v268
    %v559 = vunpack.c.l.b16 %v269
    %v560 = vunpack.c.h.b16 %v269
    %v561 = vunpack.c.l.b16 %v270
    %v562 = vunpack.c.l.b16 %v271
    %v563 = vunpack.c.h.b16 %v271
    %v564 = vunpack.c.l.b16 %v272
    %v565 = vunpack.c.l.b16 %v273
    %v566 = vunpack.c.h.b16 %v273
    %v567 = vunpack.c.l.b16 %v274
    %v568 = vunpack.c.l.b16 %v275
    %v569 = vunpack.c.h.b16 %v275
    %v570 = vunpack.c.l.b16 %v276
    %v571 = vunpack.c.l.b16 %v277
    %v572 = vunpack.c.h.b16 %v277
    %v573 = vunpack.c.l.b16 %v278
    %v574 = vunpack.c.l.b16 %v279
    %v575 = vunpack.c.h.b16 %v279
    %v576 = vunpack.c.l.b16 %v280
    %v577 = vunpack.c.l.b16 %v281
    %v578 = vunpack.c.h.b16 %v281
    %v579 = vunpack.c.l.b16 %v282
    %v580 = vunpack.c.l.b16 %v283
    %v581 = vunpack.c.h.b16 %v283
    %v582 = vunpack.c.l.b16 %v284
    %v583 = vunpack.c.l.b16 %v285
    %v584 = vunpack.c.h.b16 %v285
    %v585 = vunpack.c.l.b16 %v286
    %v586 = vunpack.c.l.b16 %v287
    %v587 = vunpack.c.h.b16 %v287
    %v588 = vunpack.c.l.b16 %v288
    %v589 = vunpack.c.l.b16 %v289
    %v590 = vunpack.c.h.b16 %v289
    %v591 = vunpack.c.l.b16 %v290
    %v592 = vunpack.c.l.b16 %v291
    %v593 = vunpack.c.h.b16 %v291
    %v594 = vunpack.c.l.b16 %v292
    %v595 = vunpack.c.l.b16 %v293
    %v596 = vunpack.c.h.b16 %v293
    %v597 = vunpack.c.l.b16 %v294
    %v598 = vunpack.c.l.b16 %v295
    %v599 = vunpack.c.h.b16 %v295
    %v600 = vunpack.c.l.b16 %v296
    %v601 = vunpack.c.l.b16 %v297
    %v602 = vunpack.c.h.b16 %v297
    %v603 = vunpack.c.l.b16 %v298
    %v604 = vunpack.c.l.b16 %v299
    %v605 = vunpack.c.h.b16 %v299
    %v606 = vunpack.c.l.b16 %v300
    %v607 = vunpack.c.l.b16 %v301
    %v608 = vunpack.c.h.b16 %v301
    %v609 = vunpack.c.l.b16 %v302
    %v610 = vunpack.c.l.b16 %v303
    %v611 = vunpack.c.h.b16 %v303
    %v612 = vunpack.c.l.b16 %v304
    %v613 = vunpack.c.l.b16 %v305
    %v614 = vunpack.c.h.b16 %v305
    %v615 = vunpack.c.l.b16 %v306
    %v616 = vunpack.c.l.b16 %v307
    %v617 = vunpack.c.h.b16 %v307
    %v618 = vunpack.c.l.b16 %v308
    %v619 = vunpack.c.l.b16 %v309
    %v620 = vunpack.c.h.b16 %v309
    %v621 = vunpack.c.l.b16 %v310
    %v622 = vunpack.c.l.b16 %v311
    %v623 = vunpack.c.h.b16 %v311
    %v624 = vunpack.c.l.b16 %v312
    %v625 = vunpack.c.l.b16 %v313
    %v626 = vunpack.c.h.b16 %v313
    %v627 = vunpack.c.l.b16 %v314
    %v628 = vunpack.c.l.b16 %v315
    %v629 = vunpack.c.h.b16 %v315
    %v630 = vunpack.c.l.b16 %v316
    %v631 = vunpack.c.l.b16 %v317
    %v632 = vunpack.c.h.b16 %v317
    %v633 = vunpack.c.l.b16 %v318
    %v634 = vunpack.c.l.b16 %v319
    %v635 = vunpack.c.h.b16 %v319
    %v636 = vunpack.c.l.b16 %v320
    %v637 = vunpack.c.l.b16 %v321
    %v638 = vunpack.c.h.b16 %v321
    %v639 = vunpack.c.l.b16 %v322
    %v640 = vunpack.c.l.b16 %v323
    %v641 = vunpack.c.h.b16 %v323
    %v642 = vunpack.c.l.b16 %v324
    %v643 = vunpack.c.l.b16 %v325
    %v644 = vunpack.c.h.b16 %v325
    %v645 = vunpack.c.l.b16 %v326
    %v646 = vunpack.c.l.b16 %v327
    %v647 = vunpack.c.h.b16 %v327
    %v648 = vunpack.c.l.b16 %v328
    %v649 = vunpack.c.l.b16 %v329
    %v650 = vunpack.c.h.b16 %v329
    %v651 = vunpack.c.l.b16 %v330
    %v652 = vunpack.c.l.b16 %v331
    %v653 = vunpack.c.h.b16 %v331
    %v654 = vunpack.c.l.b16 %v332
    %v655 = vunpack.c.l.b16 %v333
    %v656 = vunpack.c.h.b16 %v333
    %v657 = vunpack.c.l.b16 %v334
    %v658 = vunpack.c.l.b16 %v335
    %v659 = vunpack.c.h.b16 %v335
    %v660 = vunpack.c.l.b16 %v336
    %v661 = vunpack.c.l.b16 %v337
    %v662 = vunpack.c.h.b16 %v337
    %v663 = vunpack.c.l.b16 %v338
    %v664 = vunpack.c.l.b16 %v339
    %v665 = vunpack.c.h.b16 %v339
    %v666 = vunpack.c.l.b16 %v340
    %v667 = vunpack.c.l.b16 %v341
    %v668 = vunpack.c.h.b16 %v341
    %v669 = vunpack.c.l.b16 %v342
    %v670 = vunpack.c.l.b16 %v343
    %v671 = vunpack.c.h.b16 %v343
    %v672 = vunpack.c.l.b16 %v344
    %v673 = vpack.c.b16 %v484, %v481
    %v674 = vpack.c.b16 %v485, %v482
    %v675 = vpack.c.b16 %v486, %v483
    %v676 = vpack.c.b16 %v490, %v487
    %v677 = vpack.c.b16 %v491, %v488
    %v678 = vpack.c.b16 %v492, %v489
    %v679 = vpack.c.b16 %v496, %v493
    %v680 = vpack.c.b16 %v497, %v494
    %v681 = vpack.c.b16 %v498, %v495
    %v682 = vpack.c.b16 %v502, %v499
    %v683 = vpack.c.b16 %v503, %v500
    %v684 = vpack.c.b16 %v504, %v501
    %v685 = vpack.c.b16 %v508, %v505
    %v686 = vpack.c.b16 %v509, %v506
    %v687 = vpack.c.b16 %v510, %v507
    %v688 = vpack.c.b16 %v514, %v511
    %v689 = vpack.c.b16 %v515, %v512
    %v690 = vpack.c.b16 %v516, %v513
    %v691 = vpack.c.b16 %v520, %v517
    %v692 = vpack.c.b16 %v521, %v518
    %v693 = vpack.c.b16 %v522, %v519
    %v694 = vpack.c.b16 %v526, %v523
    %v695 = vpack.c.b16 %v527, %v524
    %v696 = vpack.c.b16 %v528, %v525
    %v697 = vpack.c.b16 %v532, %v529
    %v698 = vpack.c.b16 %v533, %v530
    %v699 = vpack.c.b16 %v534, %v531
    %v700 = vpack.c.b16 %v538, %v535
    %v701 = vpack.c.b16 %v539, %v536
    %v702 = vpack.c.b16 %v540, %v537
    %v703 = vpack.c.b16 %v544, %v541
    %v704 = vpack.c.b16 %v545, %v542
    %v705 = vpack.c.b16 %v546, %v543
    %v706 = vpack.c.b16 %v550, %v547
    %v707 = vpack.c.b16 %v551, %v548
    %v708 = vpack.c.b16 %v552, %v549
    %v709 = vpack.c.b16 %v556, %v553
    %v710 = vpack.c.b16 %v557, %v554
    %v711 = vpack.c.b16 %v558, %v555
    %v712 = vpack.c.b16 %v562, %v559
    %v713 = vpack.c.b16 %v563, %v560
    %v714 = vpack.c.b16 %v564, %v561
    %v715 = vpack.c.b16 %v568, %v565
    %v716 = vpack.c.b16 %v569, %v566
    %v717 = vpack.c.b16 %v570, %v567
    %v718 = vpack.c.b16 %v574, %v571
    %v719 = vpack.c.b16 %v575, %v572
    %v720 = vpack.c.b16 %v576, %v573
    %v721 = vpack.c.b16 %v580, %v577
    %v722 = vpack.c.b16 %v581, %v578
    %v723 = vpack.c.b16 %v582, %v579
    %v724 = vpack.c.b16 %v586, %v583
    %v725 = vpack.c.b16 %v587, %v584
    %v726 = vpack.c.b16 %v588, %v585
    %v727 = vpack.c.b16 %v592, %v589
    %v728 = vpack.c.b16 %v593, %v590
    %v729 = vpack.c.b16 %v594, %v591
    %v730 = vpack.c.b16 %v598, %v595
    %v731 = vpack.c.b16 %v599, %v596
    %v732 = vpack.c.b16 %v600, %v597
    %v733 = vpack.c.b16 %v604, %v601
    %v734 = vpack.c.b16 %v605, %v602
    %v735 = vpack.c.b16 %v606, %v603
    %v736 = vpack.c.b16 %v610, %v607
    %v737 = vpack.c.b16 %v611, %v608
    %v738 = vpack.c.b16 %v612, %v609
    %v739 = vpack.c.b16 %v616, %v613
    %v740 = vpack.c.b16 %v617, %v614
    %v741 = vpack.c.b16 %v618, %v615
    %v742 = vpack.c.b16 %v622, %v619
    %v743 = vpack.c.b16 %v623, %v620
    %v744 = vpack.c.b16 %v624, %v621
    %v745 = vpack.c.b16 %v628, %v625
    %v746 = vpack.c.b16 %v629, %v626
    %v747 = vpack.c.b16 %v630, %v627
    %v748 = vpack.c.b16 %v634, %v631
    %v749 = vpack.c.b16 %v635, %v632
    %v750 = vpack.c.b16 %v636, %v633
    %v751 = vpack.c.b16 %v640, %v637
    %v752 = vpack.c.b16 %v641, %v638
    %v753 = vpack.c.b16 %v642, %v639
    %v754 = vpack.c.b16 %v646, %v643
    %v755 = vpack.c.b16 %v647, %v644
    %v756 = vpack.c.b16 %v648, %v645
    %v757 = vpack.c.b16 %v652, %v649
    %v758 = vpack.c.b16 %v653, %v650
    %v759 = vpack.c.b16 %v654, %v651
    %v760 = vpack.c.b16 %v658, %v655
    %v761 = vpack.c.b16 %v659, %v656
    %v762 = vpack.c.b16 %v660, %v657
    %v763 = vpack.c.b16 %v664, %v661
    %v764 = vpack.c.b16 %v665, %v662
    %v765 = vpack.c.b16 %v666, %v663
    %v766 = vpack.c.b16 %v670, %v667
    %v767 = vpack.c.b16 %v671, %v668
    %v768 = vpack.c.b16 %v672, %v669
    %865 = vmatpush.bf16.msra.mxu0 %v694
    %866 = vmatpush.bf16.msra.mxu0 %v691
    %867 = vmatpush.bf16.msra.mxu0 %v688
    %868 = vmatpush.bf16.msra.mxu0 %v685
    %869 = vmatpush.bf16.msra.mxu0 %v682
    %870 = vmatpush.bf16.msra.mxu0 %v679
    %871 = vmatpush.bf16.msra.mxu0 %v676
    %872 = vmatpush.bf16.msra.mxu0 %v673
    %873 = vmatmul.bf16.gmra.mxu0 %v213
    %v874 = vpop.f32.mrf.mxu0
    %v875 = vadd.f32 %v347, %v874
    %v876 = vpop.f32.mrf.mxu0
    %v877 = vadd.f32 %v347, %v876
    %878 = vdwg.mxu0
    %879 = vmatpush.bf16.msra.mxu0 %v718
    %880 = vmatpush.bf16.msra.mxu0 %v715
    %881 = vmatpush.bf16.msra.mxu0 %v712
    %882 = vmatpush.bf16.msra.mxu0 %v709
    %883 = vmatpush.bf16.msra.mxu0 %v706
    %884 = vmatpush.bf16.msra.mxu0 %v703
    %885 = vmatpush.bf16.msra.mxu0 %v700
    %886 = vmatpush.bf16.msra.mxu0 %v697
    %887 = vmatmul.bf16.gmra.mxu0 %v214
    %v888 = vpop.f32.mrf.mxu0
    %v889 = vadd.f32 %v875, %v888
    %v890 = vpop.f32.mrf.mxu0
    %v891 = vadd.f32 %v877, %v890
    %892 = vdwg.mxu0
    %893 = vmatpush.bf16.msra.mxu0 %v742
    %894 = vmatpush.bf16.msra.mxu0 %v739
    %895 = vmatpush.bf16.msra.mxu0 %v736
    %896 = vmatpush.bf16.msra.mxu0 %v733
    %897 = vmatpush.bf16.msra.mxu0 %v730
    %898 = vmatpush.bf16.msra.mxu0 %v727
    %899 = vmatpush.bf16.msra.mxu0 %v724
    %900 = vmatpush.bf16.msra.mxu0 %v721
    %901 = vmatmul.bf16.gmra.mxu0 %v215
    %v902 = vpop.f32.mrf.mxu0
    %v903 = vadd.f32 %v889, %v902
    %v904 = vpop.f32.mrf.mxu0
    %v905 = vadd.f32 %v891, %v904
    %906 = vdwg.mxu0
    %907 = vmatpush.bf16.msra.mxu0 %v766
    %908 = vmatpush.bf16.msra.mxu0 %v763
    %909 = vmatpush.bf16.msra.mxu0 %v760
    %910 = vmatpush.bf16.msra.mxu0 %v757
    %911 = vmatpush.bf16.msra.mxu0 %v754
    %912 = vmatpush.bf16.msra.mxu0 %v751
    %913 = vmatpush.bf16.msra.mxu0 %v748
    %914 = vmatpush.bf16.msra.mxu0 %v745
    %915 = vmatmul.bf16.gmra.mxu0 %v216
    %v916 = vpop.f32.mrf.mxu0
    %v917 = vadd.f32 %v903, %v916
    %v918 = vpop.f32.mrf.mxu0
    %v919 = vadd.f32 %v905, %v918
    %920 = vdwg.mxu0
    %921 = vmatpush.bf16.msra.mxu0 %v695
    %922 = vmatpush.bf16.msra.mxu0 %v692
    %923 = vmatpush.bf16.msra.mxu0 %v689
    %924 = vmatpush.bf16.msra.mxu0 %v686
    %925 = vmatpush.bf16.msra.mxu0 %v683
    %926 = vmatpush.bf16.msra.mxu0 %v680
    %927 = vmatpush.bf16.msra.mxu0 %v677
    %928 = vmatpush.bf16.msra.mxu0 %v674
    %929 = vmatmul.bf16.gmra.mxu0 %v213
    %v930 = vpop.f32.mrf.mxu0
    %v931 = vadd.f32 %v348, %v930
    %v932 = vpop.f32.mrf.mxu0
    %v933 = vadd.f32 %v348, %v932
    %934 = vdwg.mxu0
    %935 = vmatpush.bf16.msra.mxu0 %v719
    %936 = vmatpush.bf16.msra.mxu0 %v716
    %937 = vmatpush.bf16.msra.mxu0 %v713
    %938 = vmatpush.bf16.msra.mxu0 %v710
    %939 = vmatpush.bf16.msra.mxu0 %v707
    %940 = vmatpush.bf16.msra.mxu0 %v704
    %941 = vmatpush.bf16.msra.mxu0 %v701
    %942 = vmatpush.bf16.msra.mxu0 %v698
    %943 = vmatmul.bf16.gmra.mxu0 %v214
    %v944 = vpop.f32.mrf.mxu0
    %v945 = vadd.f32 %v931, %v944
    %v946 = vpop.f32.mrf.mxu0
    %v947 = vadd.f32 %v933, %v946
    %948 = vdwg.mxu0
    %949 = vmatpush.bf16.msra.mxu0 %v743
    %950 = vmatpush.bf16.msra.mxu0 %v740
    %951 = vmatpush.bf16.msra.mxu0 %v737
    %952 = vmatpush.bf16.msra.mxu0 %v734
    %953 = vmatpush.bf16.msra.mxu0 %v731
    %954 = vmatpush.bf16.msra.mxu0 %v728
    %955 = vmatpush.bf16.msra.mxu0 %v725
    %956 = vmatpush.bf16.msra.mxu0 %v722
    %957 = vmatmul.bf16.gmra.mxu0 %v215
    %v958 = vpop.f32.mrf.mxu0
    %v959 = vadd.f32 %v945, %v958
    %v960 = vpop.f32.mrf.mxu0
    %v961 = vadd.f32 %v947, %v960
    %962 = vdwg.mxu0
    %963 = vmatpush.bf16.msra.mxu0 %v767
    %964 = vmatpush.bf16.msra.mxu0 %v764
    %965 = vmatpush.bf16.msra.mxu0 %v761
    %966 = vmatpush.bf16.msra.mxu0 %v758
    %967 = vmatpush.bf16.msra.mxu0 %v755
    %968 = vmatpush.bf16.msra.mxu0 %v752
    %969 = vmatpush.bf16.msra.mxu0 %v749
    %970 = vmatpush.bf16.msra.mxu0 %v746
    %971 = vmatmul.bf16.gmra.mxu0 %v216
    %v972 = vpop.f32.mrf.mxu0
    %v973 = vadd.f32 %v959, %v972
    %v974 = vpop.f32.mrf.mxu0
    %v975 = vadd.f32 %v961, %v974
    %976 = vdwg.mxu0
    %977 = vmatpush.bf16.msra.mxu0 %v696
    %978 = vmatpush.bf16.msra.mxu0 %v693
    %979 = vmatpush.bf16.msra.mxu0 %v690
    %980 = vmatpush.bf16.msra.mxu0 %v687
    %981 = vmatpush.bf16.msra.mxu0 %v684
    %982 = vmatpush.bf16.msra.mxu0 %v681
    %983 = vmatpush.bf16.msra.mxu0 %v678
    %984 = vmatpush.bf16.msra.mxu0 %v675
    %985 = vmatmul.bf16.gmra.mxu0 %v213
    %v986 = vpop.f32.mrf.mxu0
    %v987 = vadd.f32 %v349, %v986
    %v988 = vpop.f32.mrf.mxu0
    %v989 = vadd.f32 %v349, %v988
    %990 = vdwg.mxu0
    %991 = vmatpush.bf16.msra.mxu0 %v720
    %992 = vmatpush.bf16.msra.mxu0 %v717
    %993 = vmatpush.bf16.msra.mxu0 %v714
    %994 = vmatpush.bf16.msra.mxu0 %v711
    %995 = vmatpush.bf16.msra.mxu0 %v708
    %996 = vmatpush.bf16.msra.mxu0 %v705
    %997 = vmatpush.bf16.msra.mxu0 %v702
    %998 = vmatpush.bf16.msra.mxu0 %v699
    %999 = vmatmul.bf16.gmra.mxu0 %v214
    %v1000 = vpop.f32.mrf.mxu0
    %v1001 = vadd.f32 %v987, %v1000
    %v1002 = vpop.f32.mrf.mxu0
    %v1003 = vadd.f32 %v989, %v1002
    %1004 = vdwg.mxu0
    %1005 = vmatpush.bf16.msra.mxu0 %v744
    %1006 = vmatpush.bf16.msra.mxu0 %v741
    %1007 = vmatpush.bf16.msra.mxu0 %v738
    %1008 = vmatpush.bf16.msra.mxu0 %v735
    %1009 = vmatpush.bf16.msra.mxu0 %v732
    %1010 = vmatpush.bf16.msra.mxu0 %v729
    %1011 = vmatpush.bf16.msra.mxu0 %v726
    %1012 = vmatpush.bf16.msra.mxu0 %v723
    %1013 = vmatmul.bf16.gmra.mxu0 %v215
    %v1014 = vpop.f32.mrf.mxu0
    %v1015 = vadd.f32 %v1001, %v1014
    %v1016 = vpop.f32.mrf.mxu0
    %v1017 = vadd.f32 %v1003, %v1016
    %1018 = vdwg.mxu0
    %1019 = vmatpush.bf16.msra.mxu0 %v768
    %1020 = vmatpush.bf16.msra.mxu0 %v765
    %1021 = vmatpush.bf16.msra.mxu0 %v762
    %1022 = vmatpush.bf16.msra.mxu0 %v759
    %1023 = vmatpush.bf16.msra.mxu0 %v756
    %1024 = vmatpush.bf16.msra.mxu0 %v753
    %1025 = vmatpush.bf16.msra.mxu0 %v750
    %1026 = vmatpush.bf16.msra.mxu0 %v747
    %1027 = vmatmul.bf16.gmra.mxu0 %v216
    %v1028 = vpop.f32.mrf.mxu0
    %v1029 = vadd.f32 %v1015, %v1028
    %v1030 = vpop.f32.mrf.mxu0
    %v1031 = vadd.f32 %v1017, %v1030
    %1032 = vdwg.mxu0
    %v1033 = vmax.f32 %v917, 0.0
    %v1034 = vmax.f32 %v973, 0.0
    %v1035 = vmax.f32 %v1029, 0.0
    %v1036 = vmax.f32 %v919, 0.0
    %v1037 = vmax.f32 %v975, 0.0
    %v1038 = vmax.f32 %v1031, 0.0
    %v1039 = vpack.c.bf16 %v1036, %v1033
    %v1040 = vpack.c.bf16 %v1037, %v1034
    %v1041 = vpack.c.bf16 %v1038, %v1035
    %v1042 = vld [vmem:[#allocation10] sm:$0xf]
    %v1043 = vld [vmem:[#allocation10 + $0x4] sm:$0xf]
    %v1044 = vld [vmem:[#allocation10 + $0x8] sm:$0xf]
    %v1045 = vld [vmem:[#allocation10 + $0xc] sm:$0xf]
    %v1046 = vld [vmem:[#allocation10 + $0x10] sm:$0xf]
    %v1047 = vld [vmem:[#allocation10 + $0x14] sm:$0xf]
    %v1048 = vld [vmem:[#allocation10 + $0x18] sm:$0xf]
    %v1049 = vld [vmem:[#allocation10 + $0x1c] sm:$0xf]
    %v1050 = vld [vmem:[#allocation10 + $0x20] sm:$0xf]
    %v1051 = vld [vmem:[#allocation10 + $0x24] sm:$0xf]
    %v1052 = vld [vmem:[#allocation10 + $0x28] sm:$0xf]
    %v1053 = vld [vmem:[#allocation10 + $0x2c] sm:$0xf]
    %v1054 = vld [vmem:[#allocation10 + $0x30] sm:$0xf]
    %v1055 = vld [vmem:[#allocation10 + $0x34] sm:$0xf]
    %v1056 = vld [vmem:[#allocation10 + $0x38] sm:$0xf]
    %v1057 = vld [vmem:[#allocation10 + $0x3c] sm:$0xf]
    %v1058 = vld [vmem:[#allocation10 + $0x40] sm:$0xf]
    %v1059 = vld [vmem:[#allocation10 + $0x44] sm:$0xf]
    %v1060 = vld [vmem:[#allocation10 + $0x48] sm:$0xf]
    %v1061 = vld [vmem:[#allocation10 + $0x4c] sm:$0xf]
    %v1062 = vld [vmem:[#allocation10 + $0x50] sm:$0xf]
    %v1063 = vld [vmem:[#allocation10 + $0x54] sm:$0xf]
    %v1064 = vld [vmem:[#allocation10 + $0x58] sm:$0xf]
    %v1065 = vld [vmem:[#allocation10 + $0x5c] sm:$0xf]
    %v1066 = vld [vmem:[#allocation10 + $0x60] sm:$0xf]
    %v1067 = vld [vmem:[#allocation10 + $0x64] sm:$0xf]
    %v1068 = vld [vmem:[#allocation10 + $0x68] sm:$0xf]
    %v1069 = vld [vmem:[#allocation10 + $0x6c] sm:$0xf]
    %v1070 = vld [vmem:[#allocation10 + $0x70] sm:$0xf]
    %v1071 = vld [vmem:[#allocation10 + $0x74] sm:$0xf]
    %v1072 = vld [vmem:[#allocation10 + $0x78] sm:$0xf]
    %v1073 = vld [vmem:[#allocation10 + $0x7c] sm:$0xf]
    %v1074 = vld [vmem:[#allocation10 + $0x80] sm:$0xf]
    %v1075 = vld [vmem:[#allocation10 + $0x84] sm:$0xf]
    %v1076 = vld [vmem:[#allocation10 + $0x88] sm:$0xf]
    %v1077 = vld [vmem:[#allocation10 + $0x8c] sm:$0xf]
    %v1078 = vld [vmem:[#allocation10 + $0x90] sm:$0xf]
    %v1079 = vld [vmem:[#allocation10 + $0x94] sm:$0xf]
    %v1080 = vld [vmem:[#allocation10 + $0x98] sm:$0xf]
    %v1081 = vld [vmem:[#allocation10 + $0x9c] sm:$0xf]
    %v1082 = vld [vmem:[#allocation10 + $0xa0] sm:$0xf]
    %v1083 = vld [vmem:[#allocation10 + $0xa4] sm:$0xf]
    %v1084 = vld [vmem:[#allocation10 + $0xa8] sm:$0xf]
    %v1085 = vld [vmem:[#allocation10 + $0xac] sm:$0xf]
    %v1086 = vld [vmem:[#allocation10 + $0xb0] sm:$0xf]
    %v1087 = vld [vmem:[#allocation10 + $0xb4] sm:$0xf]
    %v1088 = vld [vmem:[#allocation10 + $0xb8] sm:$0xf]
    %v1089 = vld [vmem:[#allocation10 + $0xbc] sm:$0xf]
    %v1090 = vld [vmem:[%s6] sm:$0x1]
    %v1092 = vperm.slane %v1090, 0
    %v1142 = vunpack.c.l.b16 %v1042
    %v1143 = vunpack.c.l.b16 %v1043
    %v1144 = vunpack.c.l.b16 %v1044
    %v1145 = vunpack.c.l.b16 %v1045
    %v1146 = vunpack.c.l.b16 %v1046
    %v1147 = vunpack.c.l.b16 %v1047
    %v1148 = vunpack.c.l.b16 %v1048
    %v1149 = vunpack.c.l.b16 %v1049
    %v1150 = vunpack.c.l.b16 %v1050
    %v1151 = vunpack.c.l.b16 %v1051
    %v1152 = vunpack.c.l.b16 %v1052
    %v1153 = vunpack.c.l.b16 %v1053
    %v1154 = vunpack.c.l.b16 %v1054
    %v1155 = vunpack.c.l.b16 %v1055
    %v1156 = vunpack.c.l.b16 %v1056
    %v1157 = vunpack.c.l.b16 %v1057
    %v1158 = vunpack.c.l.b16 %v1058
    %v1159 = vunpack.c.l.b16 %v1059
    %v1160 = vunpack.c.l.b16 %v1060
    %v1161 = vunpack.c.l.b16 %v1061
    %v1162 = vunpack.c.l.b16 %v1062
    %v1163 = vunpack.c.l.b16 %v1063
    %v1164 = vunpack.c.l.b16 %v1064
    %v1165 = vunpack.c.l.b16 %v1065
    %v1166 = vunpack.c.l.b16 %v1066
    %v1167 = vunpack.c.l.b16 %v1067
    %v1168 = vunpack.c.l.b16 %v1068
    %v1169 = vunpack.c.l.b16 %v1069
    %v1170 = vunpack.c.l.b16 %v1070
    %v1171 = vunpack.c.l.b16 %v1071
    %v1172 = vunpack.c.l.b16 %v1072
    %v1173 = vunpack.c.l.b16 %v1073
    %v1174 = vunpack.c.l.b16 %v1074
    %v1175 = vunpack.c.l.b16 %v1075
    %v1176 = vunpack.c.l.b16 %v1076
    %v1177 = vunpack.c.l.b16 %v1077
    %v1178 = vunpack.c.l.b16 %v1078
    %v1179 = vunpack.c.l.b16 %v1079
    %v1180 = vunpack.c.l.b16 %v1080
    %v1181 = vunpack.c.l.b16 %v1081
    %v1182 = vunpack.c.l.b16 %v1082
    %v1183 = vunpack.c.l.b16 %v1083
    %v1184 = vunpack.c.l.b16 %v1084
    %v1185 = vunpack.c.l.b16 %v1085
    %v1186 = vunpack.c.l.b16 %v1086
    %v1187 = vunpack.c.l.b16 %v1087
    %v1188 = vunpack.c.l.b16 %v1088
    %v1189 = vunpack.c.l.b16 %v1089
    %v1190 = vpack.c.b16 %v1143, %v1142
    %v1191 = vpack.c.b16 %v1145, %v1144
    %v1192 = vpack.c.b16 %v1147, %v1146
    %v1193 = vpack.c.b16 %v1149, %v1148
    %v1194 = vpack.c.b16 %v1151, %v1150
    %v1195 = vpack.c.b16 %v1153, %v1152
    %v1196 = vpack.c.b16 %v1155, %v1154
    %v1197 = vpack.c.b16 %v1157, %v1156
    %v1198 = vpack.c.b16 %v1159, %v1158
    %v1199 = vpack.c.b16 %v1161, %v1160
    %v1200 = vpack.c.b16 %v1163, %v1162
    %v1201 = vpack.c.b16 %v1165, %v1164
    %v1202 = vpack.c.b16 %v1167, %v1166
    %v1203 = vpack.c.b16 %v1169, %v1168
    %v1204 = vpack.c.b16 %v1171, %v1170
    %v1205 = vpack.c.b16 %v1173, %v1172
    %v1206 = vpack.c.b16 %v1175, %v1174
    %v1207 = vpack.c.b16 %v1177, %v1176
    %v1208 = vpack.c.b16 %v1179, %v1178
    %v1209 = vpack.c.b16 %v1181, %v1180
    %v1210 = vpack.c.b16 %v1183, %v1182
    %v1211 = vpack.c.b16 %v1185, %v1184
    %v1212 = vpack.c.b16 %v1187, %v1186
    %v1213 = vpack.c.b16 %v1189, %v1188
    %1238 = vmatpush.bf16.msra.mxu0 %v1197
    %1239 = vmatpush.bf16.msra.mxu0 %v1196
    %1240 = vmatpush.bf16.msra.mxu0 %v1195
    %1241 = vmatpush.bf16.msra.mxu0 %v1194
    %1242 = vmatpush.bf16.msra.mxu0 %v1193
    %1243 = vmatpush.bf16.msra.mxu0 %v1192
    %1244 = vmatpush.bf16.msra.mxu0 %v1191
    %1245 = vmatpush.bf16.msra.mxu0 %v1190
    %1246 = vmatmul.bf16.gmra.mxu0 %v1039
    %v1247 = vpop.f32.mrf.mxu0
    %v1248 = vadd.f32 %v1092, %v1247
    %v1249 = vpop.f32.mrf.mxu0
    %v1250 = vadd.f32 %v1092, %v1249
    %1251 = vdwg.mxu0
    %1252 = vmatpush.bf16.msra.mxu0 %v1205
    %1253 = vmatpush.bf16.msra.mxu0 %v1204
    %1254 = vmatpush.bf16.msra.mxu0 %v1203
    %1255 = vmatpush.bf16.msra.mxu0 %v1202
    %1256 = vmatpush.bf16.msra.mxu0 %v1201
    %1257 = vmatpush.bf16.msra.mxu0 %v1200
    %1258 = vmatpush.bf16.msra.mxu0 %v1199
    %1259 = vmatpush.bf16.msra.mxu0 %v1198
    %1260 = vmatmul.bf16.gmra.mxu0 %v1040
    %v1261 = vpop.f32.mrf.mxu0
    %v1262 = vadd.f32 %v1248, %v1261
    %v1263 = vpop.f32.mrf.mxu0
    %v1264 = vadd.f32 %v1250, %v1263
    %1265 = vdwg.mxu0
    %1266 = vmatpush.bf16.msra.mxu0 %v1213
    %1267 = vmatpush.bf16.msra.mxu0 %v1212
    %1268 = vmatpush.bf16.msra.mxu0 %v1211
    %1269 = vmatpush.bf16.msra.mxu0 %v1210
    %1270 = vmatpush.bf16.msra.mxu0 %v1209
    %1271 = vmatpush.bf16.msra.mxu0 %v1208
    %1272 = vmatpush.bf16.msra.mxu0 %v1207
    %1273 = vmatpush.bf16.msra.mxu0 %v1206
    %1274 = vmatmul.bf16.gmra.mxu0 %v1041
    %v1275 = vpop.f32.mrf.mxu0
    %v1276 = vadd.f32 %v1262, %v1275
    %v1277 = vpop.f32.mrf.mxu0
    %v1278 = vadd.f32 %v1264, %v1277
    %1279 = vdwg.mxu0
    %v1280 = vtanh.pop %v1276
    %v1281 = vtanh.pop %v1278
    %v1282 = vmul.f32 %v1280, 2.0
    %v1283 = vmul.f32 %v1281, 2.0
    %v1284 = vpack.c.bf16 %v1282, %v1282
    %v1285 = vpack.c.bf16 %v1283, %v1283
    %1286 = vst [vmem:[#allocation11] sm:$0xf] %v1284
    %1287 = vst [vmem:[#allocation11 + $0x4] sm:$0xf] %v1285
    // Predicated region
    $region50: #{tpu_custom_call.1} parent=1 // pred_check
      _
    $region51: #{tpu_custom_call.1} parent=1 // pred_check_branch
      %1289 = sbr.rel (0) target = $region53
    $region52: #{tpu_custom_call.1} parent=1 // pred_region
      %1291 = vsyncadd [#allocation4], 0
      %s1292 = sshll.u32 [#allocation11], 4
      %s1293 = int_to_ptr.vmem [resolvable:$true] %s1292
      %s1294 = sshll.u32 %s7, 4
      %s1295 = int_to_ptr.hbm [resolvable:$true] %s1294
      %1300 = dma.vmem_to_hbm [thread:$0]  %s1293, 128, %s1295, [#allocation4], 64, 64, 4
    $region53: #{tpu_custom_call.1} parent=1 // pred_fallthru
      _
    // Predicated region
    $region54: #{tpu_custom_call.1} parent=1 // pred_check
      _
    $region55: #{tpu_custom_call.1} parent=1 // pred_check_branch
      %1302 = sbr.rel (0) target = $region57
    $region56: #{tpu_custom_call.1} parent=1 // pred_region
      %1304 = dma.done [#allocation4], 128
    $region57: #{tpu_custom_call.1} parent=1 // pred_fallthru
      _
    %1305 = vsyncpa [#allocation3], 1
    %1306 = vsyncpa [#allocation6], 1
    %1307 = vsyncpa [#allocation9], 1
    %1308 = vsyncpa [#allocation4], 1

</llo_original>
